<compile_context>
chip_gen: v5e
topology: v5e:2x2
jax: 0.10.0
libtpu: 0.0.40
codegen_flags: <defaults>
</compile_context>

<pallas_src>
import functools

import jax
import jax.numpy as jnp
from jax.experimental import pallas as pl
from jax.experimental.pallas import tpu as pltpu


# ----------------------------- Pallas kernel --------------------------------
def _gate_conv_kernel(xT_ref, w_ref, b_ref, o_ref, *, cout):
    # xT_ref: (K, TM)      im2col patch tile, transposed (rows of X on lanes)
    # w_ref : (2*Cout, K)  fused [conv ; gate] weights (row-major over Cout)
    # b_ref : (2*Cout, 1)  fused bias, f32
    # o_ref : (Cout, TM)   lane-dense output tile, f32
    #
    # One MXU pass for both convs; f32 accumulate; f32 epilogue (VPU + EUP).
    acc = jnp.dot(w_ref[...], xT_ref[...], preferred_element_type=jnp.float32)
    acc = acc + b_ref[...]
    conv = acc[:cout, :]
    gate = acc[cout:, :]
    o_ref[...] = conv * jax.nn.sigmoid(gate)


def _default_tm(m_rows):
    # Largest row tile that (a) keeps >= 2 grid steps so v7x's two TensorCores
    # both get work, (b) stays far below VMEM budget even on v7x (64 MiB
    # physical / 32 MiB scoped default): per buffer the x tile is tm*K*4 B and
    # the output tile tm*Cout*4 B, double-buffered -> a few MiB at tm<=2048.
    if m_rows < 256:
        return 128
    half = max(128, (m_rows // 2) // 128 * 128)
    return min(2048, half)


def _fused_gated_matmul(xT, w_fused, b_fused, cout, *, tm=None):
    """Returns O^T = (conv rows) * sigmoid(gate rows), shape (Cout, M), f32."""
    K, M = xT.shape
    cout2 = w_fused.shape[0]
    assert cout2 == 2 * cout

    if tm is None:
        tm = _default_tm(M)
    m_pad = pl.cdiv(M, tm) * tm
    if m_pad != M:
        # Zero-pad ragged rows; the padded columns are sliced off afterwards.
        xT = jnp.pad(xT, ((0, 0), (0, m_pad - M)))
    grid = (m_pad // tm,)

    itemsize = jnp.dtype(xT.dtype).itemsize
    cost = pl.CostEstimate(
        flops=2 * m_pad * K * cout2 + 2 * m_pad * cout,
        transcendentals=m_pad * cout,                     # sigmoid
        bytes_accessed=(m_pad * K * itemsize              # dominant x stream
                        + cout2 * K * itemsize + cout2 * 4
                        + m_pad * cout * 4),              # output
    )

    out = pl.pallas_call(
        functools.partial(_gate_conv_kernel, cout=cout),
        out_shape=jax.ShapeDtypeStruct((cout, m_pad), jnp.float32),
        grid_spec=pltpu.PrefetchScalarGridSpec(
            num_scalar_prefetch=0,
            grid=grid,
            in_specs=[
                pl.BlockSpec((K, tm), lambda i: (0, i)),      # x^T tile
                pl.BlockSpec((cout2, K), lambda i: (0, 0)),   # fused weights
                pl.BlockSpec((cout2, 1), lambda i: (0, 0)),   # fused bias
            ],
            out_specs=pl.BlockSpec((cout, tm), lambda i: (0, i)),
        ),
        compiler_params=pltpu.CompilerParams(
            dimension_semantics=("parallel",)),
        cost_estimate=cost,
    )(xT, w_fused, b_fused)
    return out[:, :M]


# ------------------------------ JAX wrapper ----------------------------------
def gate_conv_forward(x_nchw, params, *, kernel_size, stride, pad,
                      mxu_dtype=jnp.float32, tm=None):
    """Gate_Conv forward (de_flag=0). x_nchw: [N, Cin, H, W] float32.

    mxu_dtype: dtype of the MXU operands (x_col / weights).  Use jnp.bfloat16
    on v6e/v7x to halve HBM bytes on the x stream; accumulation and the
    sigmoid-gating epilogue stay in f32 on every generation.
    """
    kh, kw = kernel_size
    sh, sw = stride
    left, right, top, bottom = pad  # torch ConstantPad2d order: (W_l, W_r, H_t, H_b)

    w_conv, b_conv, w_gate, b_gate = (
        params["w_conv"], params["b_conv"], params["w_gate"], params["b_gate"])
    cout, cin = w_conv.shape[0], w_conv.shape[1]

    # ConstantPad2d(value=0): pad last dim (W) by (left,right), H by (top,bottom)
    xp = jnp.pad(x_nchw, ((0, 0), (0, 0), (top, bottom), (left, right)))
    n, _, hp, wp = xp.shape
    h_out = (hp - kh) // sh + 1
    w_out = (wp - kw) // sw + 1

    # NHWC + im2col (glue).
    # TODO(synk): for large feature maps, build patch tiles inside the kernel
    # from an NHWC block with a KH-1 halo (or manual DMA) instead of
    # materializing the KH*KW-inflated x_col in HBM.
    x_nhwc = jnp.transpose(xp, (0, 2, 3, 1))  # [N, Hp, Wp, Cin]
    patches = []
    for ih in range(kh):
        for iw in range(kw):
            patches.append(
                x_nhwc[:, ih:ih + h_out * sh:sh, iw:iw + w_out * sw:sw, :])
    x_col = jnp.concatenate(patches, axis=-1)             # [N, Ho, Wo, KH*KW*Cin]
    K = kh * kw * cin
    M = n * h_out * w_out
    xT = x_col.reshape(M, K).T                             # (K, M): M -> lane axis

    # Reorder torch OIHW weights to the im2col K ordering (kh, kw, cin) and
    # stack conv+gate into one (2*Cout, K) operand -> single fused MXU dot.
    def to_row(w):  # [Cout, Cin, KH, KW] -> [Cout, KH*KW*Cin]
        return jnp.transpose(w, (0, 2, 3, 1)).reshape(cout, K)

    w_fused = jnp.concatenate([to_row(w_conv), to_row(w_gate)], axis=0)
    b_fused = jnp.concatenate([b_conv, b_gate], axis=0).reshape(2 * cout, 1)

    out_T = _fused_gated_matmul(
        xT.astype(mxu_dtype),
        w_fused.astype(mxu_dtype),
        b_fused.astype(jnp.float32),
        cout,
        tm=tm,
    )                                                      # (Cout, M)

    out = out_T.reshape(cout, n, h_out, w_out)             # (Cout, N, Ho, Wo)
    return jnp.transpose(out, (1, 0, 2, 3))                # NCHW


# ------------------------------ reference ------------------------------------
def gate_conv_reference(x_nchw, params, *, kernel_size, stride, pad):
    left, right, top, bottom = pad
    xp = jnp.pad(x_nchw, ((0, 0), (0, 0), (top, bottom), (left, right)))

    def conv(w, b):
        y = jax.lax.conv_general_dilated(
            xp, w, window_strides=stride, padding="VALID",
            dimension_numbers=("NCHW", "OIHW", "NCHW"))
        return y + b[None, :, None, None]

    c = conv(params["w_conv"], params["b_conv"])
    g = conv(params["w_gate"], params["b_gate"])
    return c * jax.nn.sigmoid(g)


# TODO(synk): de_flag=1 branch (ConvTranspose2d + Chomp_T) not implemented; this
# script realizes the de_flag=0 (padded Conv2d) configuration of Gate_Conv.

if __name__ == "__main__":
    key = jax.random.PRNGKey(0)

    # Module config (de_flag=0)
    N, Cin, H, W = 2, 4, 16, 16
    Cout = 8
    kernel_size = (3, 3)
    stride = (1, 1)
    pad = (1, 1, 2, 0)  # (W_left, W_right, H_top, H_bottom) — causal-ish in H

    k_x, k_wc, k_bc, k_wg, k_bg = jax.random.split(key, 5)
    x = jax.random.normal(k_x, (N, Cin, H, W), dtype=jnp.float32)

    fan_in = Cin * kernel_size[0] * kernel_size[1]
    bound = 1.0 / (fan_in ** 0.5)
    params = {
        "w_conv": jax.random.uniform(k_wc, (Cout, Cin, *kernel_size),
                                     minval=-bound, maxval=bound, dtype=jnp.float32),
        "b_conv": jax.random.uniform(k_bc, (Cout,),
                                     minval=-bound, maxval=bound, dtype=jnp.float32),
        "w_gate": jax.random.uniform(k_wg, (Cout, Cin, *kernel_size),
                                     minval=-bound, maxval=bound, dtype=jnp.float32),
        "b_gate": jax.random.uniform(k_bg, (Cout,),
                                     minval=-bound, maxval=bound, dtype=jnp.float32),
    }

    ref = gate_conv_reference(x, params, kernel_size=kernel_size,
                              stride=stride, pad=pad)

    # f32 MXU path (exact vs reference)
    fwd = jax.jit(functools.partial(
        gate_conv_forward, kernel_size=kernel_size, stride=stride, pad=pad))
    out = jax.block_until_ready(fwd(x, params))
    assert out.shape == ref.shape, (out.shape, ref.shape)
    assert jnp.allclose(out, ref, atol=1e-4, rtol=1e-4), "f32 mismatch vs reference"

    # bf16 MXU-operand path (v6e/v7x fast path; f32 accumulate + f32 epilogue)
    fwd_bf16 = jax.jit(functools.partial(
        gate_conv_forward, kernel_size=kernel_size, stride=stride, pad=pad,
        mxu_dtype=jnp.bfloat16))
    out_bf16 = jax.block_until_ready(fwd_bf16(x, params))
    assert out_bf16.shape == ref.shape
    assert jnp.allclose(out_bf16, ref, atol=3e-2, rtol=3e-2), "bf16 mismatch vs reference"

    print("KERNEL_OK")
</pallas_src>

<mosaic_0001>
module attributes {stable_mosaic.version = 11 : i64} {
  func.func @_gate_conv_kernel(%arg0: i32, %arg1: memref<36x256xf32, #tpu.memory_space<vmem>>, %arg2: memref<16x36xf32, #tpu.memory_space<vmem>>, %arg3: memref<16x1xf32, #tpu.memory_space<vmem>>, %arg4: memref<8x256xf32, #tpu.memory_space<vmem>>) attributes {dimension_semantics = [#tpu.dimension_semantics<parallel>], iteration_bounds = array<i64: 2>, scalar_prefetch = 0 : i64, scratch_operands = 0 : i64, tpu.core_type = #tpu.core_type<tc>, window_params = [{transform_indices = @transform_0, window_bounds = array<i64: 36, 256>}, {pipeline_mode = #tpu.pipeline_mode<synchronous>, transform_indices = @transform_1, window_bounds = array<i64: 16, 36>}, {pipeline_mode = #tpu.pipeline_mode<synchronous>, transform_indices = @transform_2, window_bounds = array<i64: 16, 1>}, {transform_indices = @transform_3, window_bounds = array<i64: 8, 256>}]} {
    %c0 = arith.constant 0 : index
    %c0_0 = arith.constant 0 : index
    %0 = vector.load %arg2[%c0, %c0_0] : memref<16x36xf32, #tpu.memory_space<vmem>>, vector<16x36xf32>
    %c0_1 = arith.constant 0 : index
    %c0_2 = arith.constant 0 : index
    %1 = vector.load %arg1[%c0_1, %c0_2] : memref<36x256xf32, #tpu.memory_space<vmem>>, vector<36x256xf32>
    %cst = arith.constant dense<0.000000e+00> : vector<16x256xf32>
    %2 = tpu.matmul %0, %1, %cst {dimension_numbers = #tpu.dot_dimension_numbers<[1], [0], [0], [1], [0, 0, 1, 1], [], []>} : vector<16x36xf32>, vector<36x256xf32>, vector<16x256xf32> -> vector<16x256xf32>
    %c0_3 = arith.constant 0 : index
    %c0_4 = arith.constant 0 : index
    %3 = vector.load %arg3[%c0_3, %c0_4] : memref<16x1xf32, #tpu.memory_space<vmem>>, vector<16x1xf32>
    %4 = vector.broadcast %3 : vector<16x1xf32> to vector<16x256xf32>
    %5 = arith.addf %2, %4 : vector<16x256xf32>
    %6 = vector.extract_strided_slice %5 {offsets = [0, 0], sizes = [8, 256], strides = [1, 1]} : vector<16x256xf32> to vector<8x256xf32>
    %7 = vector.extract_strided_slice %5 {offsets = [8, 0], sizes = [8, 256], strides = [1, 1]} : vector<16x256xf32> to vector<8x256xf32>
    %8 = arith.negf %7 : vector<8x256xf32>
    %9 = math.exp %8 : vector<8x256xf32>
    %cst_5 = arith.constant 1.000000e+00 : f32
    %10 = vector.broadcast %cst_5 : f32 to vector<8x256xf32>
    %11 = arith.addf %10, %9 : vector<8x256xf32>
    %12 = arith.divf %10, %11 : vector<8x256xf32>
    %13 = arith.mulf %6, %12 : vector<8x256xf32>
    %c0_6 = arith.constant 0 : index
    %c0_7 = arith.constant 0 : index
    %14 = vector.load %arg4[%c0_6, %c0_7] : memref<8x256xf32, #tpu.memory_space<vmem>>, vector<8x256xf32>
    tpu.vector_store %arg4[%c0_6, %c0_7], %13 {strides = array<i32>} : memref<8x256xf32, #tpu.memory_space<vmem>>, vector<8x256xf32>,
    return
  }
  func.func @transform_0(%arg0: i32) -> (i32, i32) {
    %c0_i32 = arith.constant 0 : i32
    %c0_i32_0 = arith.constant 0 : i32
    return %c0_i32, %arg0 : i32, i32
  }
  func.func @transform_1(%arg0: i32) -> (i32, i32) {
    %c0_i32 = arith.constant 0 : i32
    %c0_i32_0 = arith.constant 0 : i32
    %c0_i32_1 = arith.constant 0 : i32
    return %c0_i32, %c0_i32_0 : i32, i32
  }
  func.func @transform_2(%arg0: i32) -> (i32, i32) {
    %c0_i32 = arith.constant 0 : i32
    %c0_i32_0 = arith.constant 0 : i32
    %c0_i32_1 = arith.constant 0 : i32
    return %c0_i32, %c0_i32_0 : i32, i32
  }
  func.func @transform_3(%arg0: i32) -> (i32, i32) {
    %c0_i32 = arith.constant 0 : i32
    %c0_i32_0 = arith.constant 0 : i32
    return %c0_i32, %arg0 : i32, i32
  }
}

</mosaic_0001>

<llo_original>
// kernel: gate_conv_forward.1
$region0: #{gate_conv_forward.1}
  #allocation0 [shape = 'u32[]', space=smem, size = 0x4, offset = 0x4, fixed_abs, tag = 'smem constant byte address 0x4 - core index']
  #allocation1 [shape = 'u32[72,128]{1,0:T(1,128)}', space=vmem, size = 0x9000, scoped, tag = 'internal scratch']
  %s0 = inlined_call_operand.vmem [shape: f32[36,512], index: 0, kind: input, shape index: {}]
  %s1 = inlined_call_operand.vmem [shape: f32[16,36], index: 1, kind: input, shape index: {}]
  %s2 = inlined_call_operand.vmem [shape: f32[16,1], index: 2, kind: input, shape index: {}]
  %s3 = inlined_call_operand.vmem [shape: f32[8,512], index: 3, kind: output, shape index: {}]
  %s4 = sld [smem:[#allocation0]]
  $region68: #{gate_conv_forward.1} parent=0
    _
  %s6 = ssub.s32 1, %s4
  %s7 = scalar_select 0, %s6, %s4
  $region1: #{gate_conv_forward.1} parent=0
    #allocation2 [shape = 'u8[81920]{0}', space=vmem, size = 0x14000, scoped, tag = 'input window, operand 0']
    loop: start=0, step=1, limit=4
    $region2: #{gate_conv_forward.1} parent=1 // loop_pre_header
      _
    $region3: #{gate_conv_forward.1} parent=1 // loop_header
      %s9 = sphi 0, %s13
      %p10 = scmp.ge.s32.totalorder %s9, 4
      %s19 = sphi 0, %s21
      %s22 = sphi 0, %s19
      %s23 = sphi 0, %s22
      %s39 = sphi 0, %s23
      %s43 = sphi 0, %s43
      %s45 = sphi 0, %s43
      %s46 = sphi 0, %s45
      %s60 = sphi 0, %s46
      %s64 = sphi 0, %s64
      %s66 = sphi 0, %s64
      %s67 = sphi 0, %s66
      %s81 = sphi 0, %s67
      %s87 = sphi 0, %s89
      %s90 = sphi 0, %s87
      %s91 = sphi 0, %s90
      %s107 = sphi 0, %s91
    $region4: #{gate_conv_forward.1} parent=1 // loop_header_branch
      %12 = sbr.rel (%p10) target = $region8
    $region5: #{gate_conv_forward.1} parent=1 // loop_body
      %s14 = ssub.s32 %s9, 1
      %s15 = ssub.s32 %s9, 2
      %s16 = sadd.s32 %s9, 1
      %s17 = ssub.s32 %s9, %s16
      %p18 = scmp.eq.s32.totalorder %s17, 0
      %s20 = sadd.s32 %s19, 1
      %s21 = scalar_select %p18, %s19, %s20
      %p24 = pneg %p18
      %p25 = scmp.eq.s32.totalorder %s9, 1
      %p26 = por %p24, %p25
      %p27 = scmp.ne.s32.totalorder %s19, %s22
      %p28 = scmp.eq.s32.totalorder %s9, 0
      %p29 = por %p27, %p28
      %p30 = scmp.ne.s32.totalorder %s19, %s22
      %p31 = scmp.eq.s32.totalorder %s14, 1
      %p32 = por %p30, %p31
      %p33 = scmp.ne.s32.totalorder %s22, %s23
      %p34 = scmp.eq.s32.totalorder %s14, 0
      %p35 = por %p33, %p34
      %p36 = scmp.ne.s32.totalorder %s22, %s23
      %p37 = scmp.eq.s32.totalorder %s15, 1
      %p38 = por %p36, %p37
      %p40 = scmp.ne.s32.totalorder %s23, %s39
      %p41 = scmp.eq.s32.totalorder %s15, 0
      %p42 = por %p40, %p41
      %s44 = sadd.s32 %s43, 1
      %p47 = scmp.eq.s32.totalorder %s9, 1
      %p48 = scmp.ne.s32.totalorder %s43, %s45
      %p49 = scmp.eq.s32.totalorder %s9, 0
      %p50 = por %p48, %p49
      %p51 = scmp.ne.s32.totalorder %s43, %s45
      %p52 = scmp.eq.s32.totalorder %s14, 1
      %p53 = por %p51, %p52
      %p54 = scmp.ne.s32.totalorder %s45, %s46
      %p55 = scmp.eq.s32.totalorder %s14, 0
      %p56 = por %p54, %p55
      %p57 = scmp.ne.s32.totalorder %s45, %s46
      %p58 = scmp.eq.s32.totalorder %s15, 1
      %p59 = por %p57, %p58
      %p61 = scmp.ne.s32.totalorder %s46, %s60
      %p62 = scmp.eq.s32.totalorder %s15, 0
      %p63 = por %p61, %p62
      %s65 = sadd.s32 %s64, 1
      %p68 = scmp.eq.s32.totalorder %s9, 1
      %p69 = scmp.ne.s32.totalorder %s64, %s66
      %p70 = scmp.eq.s32.totalorder %s9, 0
      %p71 = por %p69, %p70
      %p72 = scmp.ne.s32.totalorder %s64, %s66
      %p73 = scmp.eq.s32.totalorder %s14, 1
      %p74 = por %p72, %p73
      %p75 = scmp.ne.s32.totalorder %s66, %s67
      %p76 = scmp.eq.s32.totalorder %s14, 0
      %p77 = por %p75, %p76
      %p78 = scmp.ne.s32.totalorder %s66, %s67
      %p79 = scmp.eq.s32.totalorder %s15, 1
      %p80 = por %p78, %p79
      %p82 = scmp.ne.s32.totalorder %s67, %s81
      %p83 = scmp.eq.s32.totalorder %s15, 0
      %p84 = por %p82, %p83
      %s85 = ssub.s32 %s9, %s16
      %p86 = scmp.eq.s32.totalorder %s85, 0
      %s88 = sadd.s32 %s87, 1
      %s89 = scalar_select %p86, %s87, %s88
      %p92 = pneg %p86
      %p93 = scmp.eq.s32.totalorder %s9, 1
      %p94 = por %p92, %p93
      %p95 = scmp.ne.s32.totalorder %s87, %s90
      %p96 = scmp.eq.s32.totalorder %s9, 0
      %p97 = por %p95, %p96
      %p98 = scmp.ne.s32.totalorder %s87, %s90
      %p99 = scmp.eq.s32.totalorder %s14, 1
      %p100 = por %p98, %p99
      %p101 = scmp.ne.s32.totalorder %s90, %s91
      %p102 = scmp.eq.s32.totalorder %s14, 0
      %p103 = por %p101, %p102
      %p104 = scmp.ne.s32.totalorder %s90, %s91
      %p105 = scmp.eq.s32.totalorder %s15, 1
      %p106 = por %p104, %p105
      %p108 = scmp.ne.s32.totalorder %s91, %s107
      %p109 = scmp.eq.s32.totalorder %s15, 0
      %p110 = por %p108, %p109
      %p111 = scmp.le.s32.totalorder 1, %s9
      %p112 = scmp.lt.s32.totalorder %s9, 3
      %p113 = pnand %p111, %p112
      %p114 = pneg %p113
      // Predicated region
      $region9: #{gate_conv_forward.1} parent=5 // pred_check
        _
      $region10: #{gate_conv_forward.1} parent=5 // pred_check_branch
        %116 = sbr.rel (%p113) target = $region12
      $region11: #{gate_conv_forward.1} parent=5 // pred_region
        %s117 = ssub.s32 %s9, 1
        // Predicated region
        $region13: #{gate_conv_forward.1} parent=11 // pred_check
          %p118 = pneg %p56
        $region14: #{gate_conv_forward.1} parent=11 // pred_check_branch
          %120 = sbr.rel (%p118) target = $region16
        $region15: #{gate_conv_forward.1} parent=11 // pred_region
          _
        $region16: #{gate_conv_forward.1} parent=11 // pred_fallthru
          _
        // Predicated region
        $region17: #{gate_conv_forward.1} parent=11 // pred_check
          %p121 = pneg %p77
        $region18: #{gate_conv_forward.1} parent=11 // pred_check_branch
          %123 = sbr.rel (%p121) target = $region20
        $region19: #{gate_conv_forward.1} parent=11 // pred_region
          _
        $region20: #{gate_conv_forward.1} parent=11 // pred_fallthru
          _
      $region12: #{gate_conv_forward.1} parent=5 // pred_fallthru
        _
      %p124 = scmp.lt.s32.totalorder %s9, 2
      // Predicated region
      $region21: #{gate_conv_forward.1} parent=5 // pred_check
        %p125 = pneg %p124
      $region22: #{gate_conv_forward.1} parent=5 // pred_check_branch
        %127 = sbr.rel (%p125) target = $region24
      $region23: #{gate_conv_forward.1} parent=5 // pred_region
        // Predicated region
        $region25: #{gate_conv_forward.1} parent=23 // pred_check
          %p128 = pneg %p29
        $region26: #{gate_conv_forward.1} parent=23 // pred_check_branch
          %130 = sbr.rel (%p128) target = $region28
        $region27: #{gate_conv_forward.1} parent=23 // pred_region
          %s131 = sand.u32 %s19, 1
          %s132 = sand.u32 %s19, 1
          %s133 = smul.addr %s132, 80
          %s134 = scalar_lea.vmem [#allocation2], %s133
          %s135 = smul.u32 2, %s9
          %s136 = smul.addr %s135, 8
          %s137 = scalar_lea.vmem %s0, %s136
          // Predicated region
          $region29: #{gate_conv_forward.1} parent=27 // pred_check
            _
          $region30: #{gate_conv_forward.1} parent=27 // pred_check_branch
            %139 = sbr.rel (0) target = $region32
          $region31: #{gate_conv_forward.1} parent=27 // pred_region
            // Predicated region
            $region33: #{gate_conv_forward.1} parent=31 // pred_check
              _
            $region34: #{gate_conv_forward.1} parent=31 // pred_check_branch
              %141 = sbr.rel (0) target = $region36
            $region35: #{gate_conv_forward.1} parent=31 // pred_region
              loop: start=0, step=1, limit=1
              $region37: #{gate_conv_forward.1} parent=35 // loop_pre_header
                _
              $region38: #{gate_conv_forward.1} parent=35 // loop_header
                %s143 = sphi 0, %s147
                %p144 = scmp.ge.s32.totalorder %s143, 1
                %s148 = sphi %s137, %s137
                %s149 = sphi %s134, %s134
              $region39: #{gate_conv_forward.1} parent=35 // loop_header_branch
                %146 = sbr.rel (%p144) target = $region43
              $region40: #{gate_conv_forward.1} parent=35 // loop_body
                %v150 = vld [vmem:[%s148] sm:$0xff]
                %151 = vst [vmem:[%s149] sm:$0xff] %v150
                %v152 = vld [vmem:[%s148 + $0x8] sm:$0xff]
                %153 = vst [vmem:[%s149 + $0x8] sm:$0xff] %v152
                %v154 = vld [vmem:[%s148 + $0x20] sm:$0xff]
                %155 = vst [vmem:[%s149 + $0x10] sm:$0xff] %v154
                %v156 = vld [vmem:[%s148 + $0x28] sm:$0xff]
                %157 = vst [vmem:[%s149 + $0x18] sm:$0xff] %v156
                %v158 = vld [vmem:[%s148 + $0x40] sm:$0xff]
                %159 = vst [vmem:[%s149 + $0x20] sm:$0xff] %v158
                %v160 = vld [vmem:[%s148 + $0x48] sm:$0xff]
                %161 = vst [vmem:[%s149 + $0x28] sm:$0xff] %v160
                %v162 = vld [vmem:[%s148 + $0x60] sm:$0xff]
                %163 = vst [vmem:[%s149 + $0x30] sm:$0xff] %v162
                %v164 = vld [vmem:[%s148 + $0x68] sm:$0xff]
                %165 = vst [vmem:[%s149 + $0x38] sm:$0xff] %v164
                %v166 = vld [vmem:[%s148 + $0x80] sm:$0xff]
                %167 = vst [vmem:[%s149 + $0x40] sm:$0xff] %v166
                %v168 = vld [vmem:[%s148 + $0x88] sm:$0xff]
                %169 = vst [vmem:[%s149 + $0x48] sm:$0xff] %v168
              $region41: #{gate_conv_forward.1} parent=35 // loop_footer
                %s147 = sadd.s32 1, %s143
              $region42: #{gate_conv_forward.1} parent=35 // loop_footer_branch
                %142 = sbr.rel target = $region38
              $region43: #{gate_conv_forward.1} parent=35 // loop_exit
                _
            $region36: #{gate_conv_forward.1} parent=31 // pred_fallthru
              _
            // Predicated region
            $region44: #{gate_conv_forward.1} parent=31 // pred_check
              _
            $region45: #{gate_conv_forward.1} parent=31 // pred_check_branch
              %171 = sbr.rel target = $region47
            $region46: #{gate_conv_forward.1} parent=31 // pred_region
              _
            $region47: #{gate_conv_forward.1} parent=31 // pred_fallthru
              _
          $region32: #{gate_conv_forward.1} parent=27 // pred_fallthru
            _
          %172 = vnop
        $region28: #{gate_conv_forward.1} parent=23 // pred_fallthru
          _
      $region24: #{gate_conv_forward.1} parent=5 // pred_fallthru
        _
      %p173 = scmp.le.s32.totalorder 1, %s9
      %p174 = scmp.lt.s32.totalorder %s9, 3
      %p175 = pnand %p173, %p174
      %p176 = pneg %p175
      // Predicated region
      $region48: #{gate_conv_forward.1} parent=5 // pred_check
        _
      $region49: #{gate_conv_forward.1} parent=5 // pred_check_branch
        %178 = sbr.rel (%p175) target = $region51
      $region50: #{gate_conv_forward.1} parent=5 // pred_region
        %s179 = ssub.s32 %s9, 1
        %s180 = sand.u32 %s22, 1
        %s181 = sand.u32 %s22, 1
        %s182 = smul.addr %s181, 80
        %s183 = scalar_lea.vmem [#allocation2], %s182
        // Predicated region
        $region52: #{gate_conv_forward.1} parent=50 // pred_check
          %p184 = pneg %p35
        $region53: #{gate_conv_forward.1} parent=50 // pred_check_branch
          %186 = sbr.rel (%p184) target = $region55
        $region54: #{gate_conv_forward.1} parent=50 // pred_region
          _
        $region55: #{gate_conv_forward.1} parent=50 // pred_fallthru
          _
        %s187 = sand.u32 %s22, 1
        %s188 = sand.u32 %s22, 1
        %s189 = smul.addr %s188, 80
        %s190 = scalar_lea.vmem [#allocation2], %s189
        %p191 = pneg %p35
        %p192 = pneg %p32
        %p193 = pneg %p56
        %p194 = pneg %p53
        %p195 = pneg %p77
        %p196 = pneg %p74
        %p197 = pneg %p103
        %p198 = pneg %p100
        %s199 = smul.u32 2, %s14
        %p200 = scmp.lt.s32.totalorder %s199, 3
        %s201 = scalar_select %p200, %s199, 3
        %s202 = smul.addr %s201, 8
        %s203 = scalar_lea.vmem %s3, %s202
        %s204 = smul.u32 2, %s14
        %s205 = smul.u32 2, %s14
        %p206 = scmp.lt.s32.totalorder %s205, 3
        %s207 = scalar_select %p206, %s205, 3
        %s208 = smul.addr %s207, 8
        %s209 = scalar_lea.vmem %s3, %s208
        %s210 = smul.u32 2, %s14
        %v211 = vld [vmem:[%s1] sm:$0xff]
        %v212 = vld [vmem:[%s1 + $0x8] sm:$0xff]
        %v213 = vld [vmem:[%s183] sm:$0xff]
        %v214 = vld [vmem:[%s183 + $0x8] sm:$0xff]
        %v215 = vld [vmem:[%s183 + $0x10] sm:$0xff]
        %v216 = vld [vmem:[%s183 + $0x18] sm:$0xff]
        %v217 = vld [vmem:[%s183 + $0x20] sm:$0xff]
        %v218 = vld [vmem:[%s183 + $0x28] sm:$0xff]
        %v219 = vld [vmem:[%s183 + $0x30] sm:$0xff]
        %v220 = vld [vmem:[%s183 + $0x38] sm:$0xff]
        %v221 = vld [vmem:[%s183 + $0x40] sm:$0xf]
        %v222 = vld [vmem:[%s183 + $0x48] sm:$0xf]
        %v223 = vld [vmem:[%s2] sm:$0xff]
        %v224 = vld [vmem:[%s2 + $0x8] sm:$0xff]
        %226 = vset.pattern.permute.xlu0 0
        %227 = vperm.xlu0 %226, %v223
        %v228 = vpop.permute.xlu0 %227
        %231 = vset.pattern.permute.xlu0 0
        %232 = vperm.xlu0 %231, %v224
        %v233 = vpop.permute.xlu0 %232
        %vm235 = vcmask 293888
        %v237 = vsel %vm235, %v211, 0
        %v240 = vsel %vm235, %v212, 0
        %vm242 = vcmask 1043456
        %v244 = vsel %vm242, %v221, 0
        %v247 = vsel %vm242, %v222, 0
        %249 = vmatpush.msra.mxu0 0.0
        %250 = vmatpush.msra.mxu0 0.0
        %251 = vmatpush.msra.mxu0 0.0
        %252 = vmatpush.msra.mxu0 0.0
        %253 = vmatpush.msra.mxu0 0.0
        %254 = vmatpush.msra.mxu0 0.0
        %255 = vmatpush.msra.mxu0 0.0
        %256 = vmatpush.msra.mxu0 0.0
        %257 = vmatpush.msra.mxu0 0.0
        %258 = vmatpush.msra.mxu0 0.0
        %259 = vmatpush.msra.mxu0 0.0
        %260 = vmatpush.msra.mxu0 %v244
        %261 = vmatpush.msra.mxu0 %v219
        %262 = vmatpush.msra.mxu0 %v217
        %263 = vmatpush.msra.mxu0 %v215
        %264 = vmatpush.msra.mxu0 %v213
        %265 = vmatmul.f32.gmra.mxu0 %v237
        %v266 = vpop.f32.mrf.mxu0
        %v267 = vadd.f32 %v228, %v266
        %268 = vmatmul.f32.gmra.mxu0 %v240
        %v269 = vpop.f32.mrf.mxu0
        %v270 = vadd.f32 %v233, %v269
        %271 = vdwg.mxu0
        %272 = vmatpush.msra.mxu0 0.0
        %273 = vmatpush.msra.mxu0 0.0
        %274 = vmatpush.msra.mxu0 0.0
        %275 = vmatpush.msra.mxu0 0.0
        %276 = vmatpush.msra.mxu0 0.0
        %277 = vmatpush.msra.mxu0 0.0
        %278 = vmatpush.msra.mxu0 0.0
        %279 = vmatpush.msra.mxu0 0.0
        %280 = vmatpush.msra.mxu0 0.0
        %281 = vmatpush.msra.mxu0 0.0
        %282 = vmatpush.msra.mxu0 0.0
        %283 = vmatpush.msra.mxu0 %v247
        %284 = vmatpush.msra.mxu0 %v220
        %285 = vmatpush.msra.mxu0 %v218
        %286 = vmatpush.msra.mxu0 %v216
        %287 = vmatpush.msra.mxu0 %v214
        %288 = vmatmul.f32.gmra.mxu0 %v237
        %v289 = vpop.f32.mrf.mxu0
        %v290 = vadd.f32 %v228, %v289
        %291 = vmatmul.f32.gmra.mxu0 %v240
        %v292 = vpop.f32.mrf.mxu0
        %v293 = vadd.f32 %v233, %v292
        %294 = vdwg.mxu0
        %v295 = vxor.u32 %v270, 2147483648
        %v296 = vxor.u32 %v293, 2147483648
        %v297 = vmul.f32 %v295, 1.442695
        %v298 = vpow.pop %v297
        %v299 = vmul.f32 %v296, 1.442695
        %v300 = vpow.pop %v299
        %v301 = vadd.f32 %v298, 1.0
        %v302 = vadd.f32 %v300, 1.0
        %v303 = vrcp.pop %v301
        %v304 = vmul.f32 %v301, %v303
        %v305 = vsub.f32 1.0, %v304
        %v306 = vmul.f32 %v303, %v305
        %v307 = vadd.f32 %v303, %v306
        %vm308 = vweird.f32 %v301
        %vm309 = vweird.f32 %v303
        %vm310 = vmor %vm308, %vm309
        %v311 = vsel %vm310, %v303, %v307
        %v312 = vand.u32 2147483647, %v301
        %vm313 = vcmp.eq.f32.partialorder %v312, 8.507059e+37
        %v314 = vand.u32 %v301, 2147483648
        %v315 = vor.u32 1.1754944e-38, %v314
        %v316 = vsel %vm313, %v315, %v311
        %v317 = vmul.f32 1.0, %v316
        %v318 = vrcp.pop %v302
        %v319 = vmul.f32 %v302, %v318
        %v320 = vsub.f32 1.0, %v319
        %v321 = vmul.f32 %v318, %v320
        %v322 = vadd.f32 %v318, %v321
        %vm323 = vweird.f32 %v302
        %vm324 = vweird.f32 %v318
        %vm325 = vmor %vm323, %vm324
        %v326 = vsel %vm325, %v318, %v322
        %v327 = vand.u32 2147483647, %v302
        %vm328 = vcmp.eq.f32.partialorder %v327, 8.507059e+37
        %v329 = vand.u32 %v302, 2147483648
        %v330 = vor.u32 1.1754944e-38, %v329
        %v331 = vsel %vm328, %v330, %v326
        %v332 = vmul.f32 1.0, %v331
        %v333 = vmul.f32 %v267, %v317
        %v334 = vmul.f32 %v290, %v332
        %335 = vst [vmem:[%s209] sm:$0xff] %v333
        %336 = vst [vmem:[%s209 + $0x8] sm:$0xff] %v334
        %s337 = smul.u32 2, %s14
        %p338 = scmp.lt.s32.totalorder %s337, 3
        %s339 = scalar_select %p338, %s337, 3
        %s340 = smul.addr %s339, 8
        %s341 = scalar_lea.vmem %s3, %s340
        // Predicated region
        $region56: #{gate_conv_forward.1} parent=50 // pred_check
          %p342 = pneg %p100
        $region57: #{gate_conv_forward.1} parent=50 // pred_check_branch
          %344 = sbr.rel (%p342) target = $region59
        $region58: #{gate_conv_forward.1} parent=50 // pred_region
          %s345 = smul.u32 2, %s14
        $region59: #{gate_conv_forward.1} parent=50 // pred_fallthru
          _
      $region51: #{gate_conv_forward.1} parent=5 // pred_fallthru
        _
      %p346 = scmp.le.s32.totalorder 2, %s9
      // Predicated region
      $region60: #{gate_conv_forward.1} parent=5 // pred_check
        %p347 = pneg %p346
      $region61: #{gate_conv_forward.1} parent=5 // pred_check_branch
        %349 = sbr.rel (%p347) target = $region63
      $region62: #{gate_conv_forward.1} parent=5 // pred_region
        %s350 = ssub.s32 %s9, 2
        // Predicated region
        $region64: #{gate_conv_forward.1} parent=62 // pred_check
          %p351 = pneg %p106
        $region65: #{gate_conv_forward.1} parent=62 // pred_check_branch
          %353 = sbr.rel (%p351) target = $region67
        $region66: #{gate_conv_forward.1} parent=62 // pred_region
          %s354 = smul.u32 2, %s15
          %p355 = scmp.lt.s32.totalorder %s354, 3
          %s356 = scalar_select %p355, %s354, 3
          %s357 = smul.addr %s356, 8
          %s358 = scalar_lea.vmem %s3, %s357
        $region67: #{gate_conv_forward.1} parent=62 // pred_fallthru
          _
      $region63: #{gate_conv_forward.1} parent=5 // pred_fallthru
        _
    $region6: #{gate_conv_forward.1} parent=1 // loop_footer
      %s13 = sadd.s32 1, %s9
    $region7: #{gate_conv_forward.1} parent=1 // loop_footer_branch
      %8 = sbr.rel target = $region3
    $region8: #{gate_conv_forward.1} parent=1 // loop_exit
      _

</llo_original>
